<compile_context>
chip_gen: v6e
topology: v6e:2x2x1
jax: 0.10.0
libtpu: 0.0.40
codegen_flags: <defaults>
</compile_context>

<pallas_src>
import functools

import jax
import jax.numpy as jnp
from jax.experimental import pallas as pl
from jax.experimental.pallas import tpu as pltpu


def _round_up(x, m):
    return (x + m - 1) // m * m


def _pick_h_tile(C, H, W, itemsize, lane_dense, target_bytes):
    """Largest H tile TH with H % TH == 0, a legal (8,128)-compatible block and
    a per-block VMEM footprint <= target_bytes (input+output are each
    double-buffered by the pipeline, so total VMEM ~= 4 * target_bytes)."""

    def block_bytes(th):
        if lane_dense:   # block (C, th*W): sublane dim C, lane dim th*W
            return _round_up(C, 8) * _round_up(th * W, 128) * itemsize
        # block (C, th, W): sublane dim th, lane dim W (padded to 128 in VMEM)
        return C * _round_up(th, 8) * _round_up(W, 128) * itemsize

    def legal(th):
        if th == H:
            return True          # full-dim blocks are always legal
        if H % th:
            return False
        return (th * W) % 128 == 0 if lane_dense else th % 8 == 0

    cands = [th for th in range(1, H + 1) if legal(th)]
    fitting = [th for th in cands if block_bytes(th) <= target_bytes]
    return max(fitting) if fitting else min(cands)


def _lane_dense_kernel(W, w_ref, x_ref, o_ref):
    """x_ref/o_ref: (C, TH*W) lane-dense; w_ref: (C, 1). W is a power of two."""
    x = x_ref[...]                                   # (C, THW)
    thw = x.shape[-1]
    acc = x * x
    # Segmented all-reduce over W-aligned, length-W lane segments: after the
    # butterfly every lane position holds sum_w x[c, h, w]^2 for its own row h,
    # so no lane-sparse (C, H, 1) intermediates and no broadcast-back needed.
    lane = jax.lax.broadcasted_iota(jnp.int32, x.shape, 1)
    b = 1
    while b < W:                                     # log2(W) steps (static)
        hi = pltpu.roll(acc, thw - b, axis=1)        # acc[c, i + b]
        lo = pltpu.roll(acc, b, axis=1)              # acc[c, i - b]
        acc = acc + jnp.where((lane & b) == 0, hi, lo)
        b *= 2
    norms = jnp.sqrt(acc)                            # (C, THW): ||x[c, h, :]||
    # 1x1 conv over channels == weighted sum over C.  C is small -> keep it on
    # the VPU as a sublane reduce (no MXU / MRF drain).
    s = jnp.sum(w_ref[...] * norms, axis=0, keepdims=True)   # (1, THW)
    o_ref[...] = s * x


def _rowmajor_kernel(w_ref, x_ref, o_ref):
    """Fallback for W that is neither a power of two nor a multiple of 128.
    x_ref/o_ref: (C, TH, W) with a (masked) W-wide lane dim; w_ref: (C, 1)."""
    x = x_ref[...]                                              # (C, TH, W)
    w = w_ref[...]                                              # (C, 1)
    norms = jnp.sqrt(jnp.sum(x * x, axis=-1, keepdims=True))    # (C, TH, 1)
    s = jnp.sum(w[:, :, None] * norms, axis=0, keepdims=True)   # (1, TH, 1)
    o_ref[...] = s * x


def single_attention(x, weight, *, donate_input=False,
                     block_target_bytes=2 * 1024 * 1024):
    """x: (B, C, H, W); weight: (1, C, 1, 1) (1x1 conv C->1, no bias)."""
    B, C, H, W = x.shape
    w2 = weight.reshape(C, 1).astype(x.dtype)
    itemsize = jnp.dtype(x.dtype).itemsize
    # If the last dim is already lane-dense (W % 128 == 0) the simple row-major
    # layout is optimal.  Otherwise, for power-of-two W we merge (H, W) into a
    # single lane axis so HBM<->VMEM<->vreg traffic stays >=128-lane dense.
    lane_dense = (W % 128 != 0) and (W & (W - 1)) == 0

    compiler_params = pltpu.CompilerParams(
        # Each (b, h-tile) writes a disjoint output tile -> shard both axes
        # across v7x's 2 TensorCores; neutral on v5e/v6e.
        dimension_semantics=("parallel", "parallel"),
        # Explicit scoped-VMEM budget; actual use is ~4 * block_target_bytes.
        vmem_limit_bytes=32 * 1024 * 1024,
    )
    # Output reuses x's HBM buffer if the caller declares x dead after this op.
    io_aliases = {1: 0} if donate_input else {}

    if lane_dense:
        TH = _pick_h_tile(C, H, W, itemsize, True, block_target_bytes)
        xr = x.reshape(B, C, H * W)              # free view (contiguous merge)
        out = pl.pallas_call(
            functools.partial(_lane_dense_kernel, W),
            out_shape=jax.ShapeDtypeStruct((B, C, H * W), x.dtype),
            grid_spec=pltpu.PrefetchScalarGridSpec(
                num_scalar_prefetch=0,
                grid=(B, H // TH),
                in_specs=[
                    pl.BlockSpec((C, 1), lambda b, h: (0, 0)),              # weight
                    pl.BlockSpec((None, C, TH * W), lambda b, h: (b, 0, h)),
                ],
                # NOTE: bump the x spec to pipeline_mode=pl.Buffered(3) if an
                # xprof trace still shows exposed DMA at step boundaries.
                out_specs=pl.BlockSpec((None, C, TH * W), lambda b, h: (b, 0, h)),
            ),
            compiler_params=compiler_params,
            input_output_aliases=io_aliases,
        )(w2, xr)
        return out.reshape(B, C, H, W)

    # TODO(synk): non-power-of-two W < 128 keeps a masked (W/128-utilized) lane
    # dim; a lane-dense variant would need a general segmented lane reduce.
    TH = _pick_h_tile(C, H, W, itemsize, False, block_target_bytes)
    return pl.pallas_call(
        _rowmajor_kernel,
        out_shape=jax.ShapeDtypeStruct((B, C, H, W), x.dtype),
        grid_spec=pltpu.PrefetchScalarGridSpec(
            num_scalar_prefetch=0,
            grid=(B, H // TH),
            in_specs=[
                pl.BlockSpec((C, 1), lambda b, h: (0, 0)),                  # weight
                pl.BlockSpec((None, C, TH, W), lambda b, h: (b, 0, h, 0)),
            ],
            out_specs=pl.BlockSpec((None, C, TH, W), lambda b, h: (b, 0, h, 0)),
        ),
        compiler_params=compiler_params,
        input_output_aliases=io_aliases,
    )(w2, x)


def single_attention_ref(x, weight):
    norms = jnp.sqrt(jnp.sum(x * x, axis=-1, keepdims=True))     # (B, C, H, 1)
    s = jnp.sum(weight.reshape(1, -1, 1, 1) * norms, axis=1, keepdims=True)
    return s * x


if __name__ == "__main__":
    key = jax.random.PRNGKey(0)
    kx, kw, kx2, kw2 = jax.random.split(key, 4)

    # Primary check: module-sized input (B, C, H, W) = (2, 4, 16, 16).
    B, C, H, W = 2, 4, 16, 16
    x = jax.random.normal(kx, (B, C, H, W), dtype=jnp.float32)
    v0 = jax.random.uniform(kw, (1, C, 1, 1), dtype=jnp.float32)  # torch.rand analog
    out = jax.block_until_ready(single_attention(x, v0))
    ref = single_attention_ref(x, v0)
    assert out.shape == (B, C, H, W)
    assert jnp.allclose(out, ref, atol=1e-5, rtol=1e-5)

    # Exercise the H-tiled pipeline (tiny block budget forces TH < H, grid=(2,2)).
    out_tiled = jax.block_until_ready(
        single_attention(x, v0, block_target_bytes=4096))
    assert jnp.allclose(out_tiled, ref, atol=1e-5, rtol=1e-5)

    # Exercise the non-power-of-two-W fallback path.
    Wf = 24
    xf = jax.random.normal(kx2, (B, C, H, Wf), dtype=jnp.float32)
    vf = jax.random.uniform(kw2, (1, C, 1, 1), dtype=jnp.float32)
    outf = jax.block_until_ready(single_attention(xf, vf))
    assert jnp.allclose(outf, single_attention_ref(xf, vf), atol=1e-5, rtol=1e-5)

    print("KERNEL_OK")
</pallas_src>

<mosaic_0001>
module attributes {stable_mosaic.version = 11 : i64} {
  func.func @_lane_dense_kernel(%arg0: i32, %arg1: i32, %arg2: memref<4x1xf32, #tpu.memory_space<vmem>>, %arg3: memref<1x4x256xf32, #tpu.memory_space<vmem>>, %arg4: memref<1x4x256xf32, #tpu.memory_space<vmem>>) attributes {dimension_semantics = [#tpu.dimension_semantics<parallel>, #tpu.dimension_semantics<parallel>], iteration_bounds = array<i64: 2, 1>, scalar_prefetch = 0 : i64, scratch_operands = 0 : i64, tpu.core_type = #tpu.core_type<tc>, window_params = [{pipeline_mode = #tpu.pipeline_mode<synchronous>, transform_indices = @transform_0, window_bounds = array<i64: 4, 1>}, {transform_indices = @transform_1, window_bounds = array<i64: 1, 4, 256>}, {transform_indices = @transform_2, window_bounds = array<i64: 1, 4, 256>}]} {
    %c0 = arith.constant 0 : index
    %c0_0 = arith.constant 0 : index
    %c0_1 = arith.constant 0 : index
    %0 = vector.load %arg3[%c0, %c0_0, %c0_1] : memref<1x4x256xf32, #tpu.memory_space<vmem>>, vector<1x4x256xf32>
    %1 = vector.shape_cast %0 : vector<1x4x256xf32> to vector<4x256xf32>
    %2 = arith.mulf %1, %1 : vector<4x256xf32>
    %3 = tpu.iota {dimensions = array<i32: 1>} : vector<4x256xi32>
    %c255_i32 = arith.constant 255 : i32
    %4 = tpu.dynamic_rotate %2 by %c255_i32 dim 1 : vector<4x256xf32>, i32 -> vector<4x256xf32>
    %c1_i32 = arith.constant 1 : i32
    %5 = tpu.dynamic_rotate %2 by %c1_i32 dim 1 : vector<4x256xf32>, i32 -> vector<4x256xf32>
    %c1_i32_2 = arith.constant 1 : i32
    %6 = vector.broadcast %c1_i32_2 : i32 to vector<4x256xi32>
    %7 = arith.andi %3, %6 : vector<4x256xi32>
    %c0_i32 = arith.constant 0 : i32
    %8 = vector.broadcast %c0_i32 : i32 to vector<4x256xi32>
    %9 = arith.cmpi eq, %7, %8 : vector<4x256xi32>
    %10 = arith.select %9, %4, %5 : vector<4x256xi1>, vector<4x256xf32>
    %11 = arith.addf %2, %10 : vector<4x256xf32>
    %c254_i32 = arith.constant 254 : i32
    %12 = tpu.dynamic_rotate %11 by %c254_i32 dim 1 : vector<4x256xf32>, i32 -> vector<4x256xf32>
    %c2_i32 = arith.constant 2 : i32
    %13 = tpu.dynamic_rotate %11 by %c2_i32 dim 1 : vector<4x256xf32>, i32 -> vector<4x256xf32>
    %c2_i32_3 = arith.constant 2 : i32
    %14 = vector.broadcast %c2_i32_3 : i32 to vector<4x256xi32>
    %15 = arith.andi %3, %14 : vector<4x256xi32>
    %c0_i32_4 = arith.constant 0 : i32
    %16 = vector.broadcast %c0_i32_4 : i32 to vector<4x256xi32>
    %17 = arith.cmpi eq, %15, %16 : vector<4x256xi32>
    %18 = arith.select %17, %12, %13 : vector<4x256xi1>, vector<4x256xf32>
    %19 = arith.addf %11, %18 : vector<4x256xf32>
    %c252_i32 = arith.constant 252 : i32
    %20 = tpu.dynamic_rotate %19 by %c252_i32 dim 1 : vector<4x256xf32>, i32 -> vector<4x256xf32>
    %c4_i32 = arith.constant 4 : i32
    %21 = tpu.dynamic_rotate %19 by %c4_i32 dim 1 : vector<4x256xf32>, i32 -> vector<4x256xf32>
    %c4_i32_5 = arith.constant 4 : i32
    %22 = vector.broadcast %c4_i32_5 : i32 to vector<4x256xi32>
    %23 = arith.andi %3, %22 : vector<4x256xi32>
    %c0_i32_6 = arith.constant 0 : i32
    %24 = vector.broadcast %c0_i32_6 : i32 to vector<4x256xi32>
    %25 = arith.cmpi eq, %23, %24 : vector<4x256xi32>
    %26 = arith.select %25, %20, %21 : vector<4x256xi1>, vector<4x256xf32>
    %27 = arith.addf %19, %26 : vector<4x256xf32>
    %c248_i32 = arith.constant 248 : i32
    %28 = tpu.dynamic_rotate %27 by %c248_i32 dim 1 : vector<4x256xf32>, i32 -> vector<4x256xf32>
    %c8_i32 = arith.constant 8 : i32
    %29 = tpu.dynamic_rotate %27 by %c8_i32 dim 1 : vector<4x256xf32>, i32 -> vector<4x256xf32>
    %c8_i32_7 = arith.constant 8 : i32
    %30 = vector.broadcast %c8_i32_7 : i32 to vector<4x256xi32>
    %31 = arith.andi %3, %30 : vector<4x256xi32>
    %c0_i32_8 = arith.constant 0 : i32
    %32 = vector.broadcast %c0_i32_8 : i32 to vector<4x256xi32>
    %33 = arith.cmpi eq, %31, %32 : vector<4x256xi32>
    %34 = arith.select %33, %28, %29 : vector<4x256xi1>, vector<4x256xf32>
    %35 = arith.addf %27, %34 : vector<4x256xf32>
    %36 = math.sqrt %35 : vector<4x256xf32>
    %c0_9 = arith.constant 0 : index
    %c0_10 = arith.constant 0 : index
    %37 = vector.load %arg2[%c0_9, %c0_10] : memref<4x1xf32, #tpu.memory_space<vmem>>, vector<4x1xf32>
    %38 = vector.broadcast %37 : vector<4x1xf32> to vector<4x256xf32>
    %39 = arith.mulf %38, %36 : vector<4x256xf32>
    %cst = arith.constant dense<0.000000e+00> : vector<256xf32>
    %40 = vector.multi_reduction <add>, %39, %cst [0] : vector<4x256xf32> to vector<256xf32>
    %41 = vector.shape_cast %40 : vector<256xf32> to vector<1x256xf32>
    %42 = vector.broadcast %41 : vector<1x256xf32> to vector<4x256xf32>
    %43 = arith.mulf %42, %1 : vector<4x256xf32>
    %c0_11 = arith.constant 0 : index
    %c0_12 = arith.constant 0 : index
    %c0_13 = arith.constant 0 : index
    %44 = vector.load %arg4[%c0_11, %c0_12, %c0_13] : memref<1x4x256xf32, #tpu.memory_space<vmem>>, vector<1x4x256xf32>
    %45 = vector.shape_cast %44 : vector<1x4x256xf32> to vector<4x256xf32>
    %46 = vector.shape_cast %43 : vector<4x256xf32> to vector<1x4x256xf32>
    tpu.vector_store %arg4[%c0_11, %c0_12, %c0_13], %46 {strides = array<i32>} : memref<1x4x256xf32, #tpu.memory_space<vmem>>, vector<1x4x256xf32>,
    return
  }
  func.func @transform_0(%arg0: i32, %arg1: i32) -> (i32, i32) {
    %c0_i32 = arith.constant 0 : i32
    %c0_i32_0 = arith.constant 0 : i32
    %c0_i32_1 = arith.constant 0 : i32
    return %c0_i32, %c0_i32_0 : i32, i32
  }
  func.func @transform_1(%arg0: i32, %arg1: i32) -> (i32, i32, i32) {
    %c0_i32 = arith.constant 0 : i32
    %c0_i32_0 = arith.constant 0 : i32
    return %arg0, %c0_i32, %arg1 : i32, i32, i32
  }
  func.func @transform_2(%arg0: i32, %arg1: i32) -> (i32, i32, i32) {
    %c0_i32 = arith.constant 0 : i32
    %c0_i32_0 = arith.constant 0 : i32
    return %arg0, %c0_i32, %arg1 : i32, i32, i32
  }
}

</mosaic_0001>

<llo_original>
// kernel: tpu_custom_call.1
$region0: #{tpu_custom_call.1}
  #allocation0 [shape = 'u32[]', space=smem, size = 0x4, offset = 0x4, fixed_abs, tag = 'smem constant byte address 0x4 - core index']
  #allocation1 [shape = 'u32[144,128]{1,0:T(1,128)}', space=vmem, size = 0x12000, scoped, tag = 'internal scratch']
  %s0 = inlined_call_operand.vmem [shape: f32[4,1], index: 0, kind: input, shape index: {}]
  %s1 = inlined_call_operand.hbm [shape: f32[2,4,256], index: 1, kind: input, shape index: {}]
  %s2 = inlined_call_operand.hbm [shape: f32[2,4,256], index: 2, kind: output, shape index: {}]
  %s3 = sld [smem:[#allocation0]]
  $region45: #{tpu_custom_call.1} parent=0
    _
  %s5 = ssub.s32 1, %s3
  %s6 = scalar_select 0, %s5, %s3
  $region1: #{tpu_custom_call.1} parent=0
    #allocation2 [shape = 'u8[8192]{0}', space=vmem, size = 0x2000, scoped, tag = 'input window, operand 1']
    #allocation3 [shape = 's32[2]{0}', space=sflag, size = 0x8, scoped, tag = 'scoped memory for tpu_custom_call.1']
    #allocation4 [shape = 's32[2]{0}', space=sflag, size = 0x8, scoped, tag = 'scoped memory for tpu_custom_call.1']
    #allocation5 [shape = 'u8[8192]{0}', space=vmem, size = 0x2000, scoped, tag = 'output window, operand 0']
    %7 = vsyncpa [#allocation3], 0
    %s8 = scalar_lea.sflag [#allocation3], 1
    %9 = vsyncpa %s8, 0
    %10 = vsyncpa [#allocation4], 0
    %s11 = scalar_lea.sflag [#allocation4], 1
    %12 = vsyncpa %s11, 0
    loop: start=0, step=1, limit=4
    $region2: #{tpu_custom_call.1} parent=1 // loop_pre_header
      _
    $region3: #{tpu_custom_call.1} parent=1 // loop_header
      %s14 = sphi 0, %s18
      %p15 = scmp.ge.s32.totalorder %s14, 4
      %s21 = sphi 0, %s33
      %s22 = sphi 0, %s29
      %s23 = sphi 0, %s21
      %s24 = sphi 0, %s22
      %s25 = sphi 0, %s23
      %s26 = sphi 0, %s24
      %s34 = sphi 0, %s34
      %s36 = sphi 0, %s34
      %s37 = sphi 0, %s36
      %s51 = sphi 0, %s37
      %s59 = sphi 0, %s61
      %s62 = sphi 0, %s59
      %s63 = sphi 0, %s62
      %s79 = sphi 0, %s63
      %s87 = sphi 0, %s89
      %s90 = sphi 0, %s87
      %s91 = sphi 0, %s90
      %s107 = sphi 0, %s91
    $region4: #{tpu_custom_call.1} parent=1 // loop_header_branch
      %17 = sbr.rel (%p15) target = $region8
    $region5: #{tpu_custom_call.1} parent=1 // loop_body
      %s19 = ssub.s32 %s14, 1
      %s20 = ssub.s32 %s14, 2
      %s27 = sadd.s32 1, %s22
      %p28 = scmp.ge.s32.totalorder %s27, 1
      %s29 = scalar_select %p28, 0, %s27
      %s30 = sadd.s32 1, %s21
      %s31 = scalar_select %p28, %s30, %s21
      %p32 = scmp.ge.s32.totalorder %s31, 2
      %s33 = scalar_select %p32, 0, %s31
      %s35 = sadd.s32 %s34, 1
      %p38 = scmp.eq.s32.totalorder %s14, 1
      %p39 = scmp.ne.s32.totalorder %s34, %s36
      %p40 = scmp.eq.s32.totalorder %s14, 0
      %p41 = por %p39, %p40
      %p42 = scmp.ne.s32.totalorder %s34, %s36
      %p43 = scmp.eq.s32.totalorder %s19, 1
      %p44 = por %p42, %p43
      %p45 = scmp.ne.s32.totalorder %s36, %s37
      %p46 = scmp.eq.s32.totalorder %s19, 0
      %p47 = por %p45, %p46
      %p48 = scmp.ne.s32.totalorder %s36, %s37
      %p49 = scmp.eq.s32.totalorder %s20, 1
      %p50 = por %p48, %p49
      %p52 = scmp.ne.s32.totalorder %s37, %s51
      %p53 = scmp.eq.s32.totalorder %s20, 0
      %p54 = por %p52, %p53
      %s55 = ssub.s32 %s21, %s33
      %s56 = ssub.s32 %s22, %s29
      %s57 = sor.u32 %s55, %s56
      %p58 = scmp.eq.s32.totalorder %s57, 0
      %s60 = sadd.s32 %s59, 1
      %s61 = scalar_select %p58, %s59, %s60
      %p64 = pneg %p58
      %p65 = scmp.eq.s32.totalorder %s14, 1
      %p66 = por %p64, %p65
      %p67 = scmp.ne.s32.totalorder %s59, %s62
      %p68 = scmp.eq.s32.totalorder %s14, 0
      %p69 = por %p67, %p68
      %p70 = scmp.ne.s32.totalorder %s59, %s62
      %p71 = scmp.eq.s32.totalorder %s19, 1
      %p72 = por %p70, %p71
      %p73 = scmp.ne.s32.totalorder %s62, %s63
      %p74 = scmp.eq.s32.totalorder %s19, 0
      %p75 = por %p73, %p74
      %p76 = scmp.ne.s32.totalorder %s62, %s63
      %p77 = scmp.eq.s32.totalorder %s20, 1
      %p78 = por %p76, %p77
      %p80 = scmp.ne.s32.totalorder %s63, %s79
      %p81 = scmp.eq.s32.totalorder %s20, 0
      %p82 = por %p80, %p81
      %s83 = ssub.s32 %s21, %s33
      %s84 = ssub.s32 %s22, %s29
      %s85 = sor.u32 %s83, %s84
      %p86 = scmp.eq.s32.totalorder %s85, 0
      %s88 = sadd.s32 %s87, 1
      %s89 = scalar_select %p86, %s87, %s88
      %p92 = pneg %p86
      %p93 = scmp.eq.s32.totalorder %s14, 1
      %p94 = por %p92, %p93
      %p95 = scmp.ne.s32.totalorder %s87, %s90
      %p96 = scmp.eq.s32.totalorder %s14, 0
      %p97 = por %p95, %p96
      %p98 = scmp.ne.s32.totalorder %s87, %s90
      %p99 = scmp.eq.s32.totalorder %s19, 1
      %p100 = por %p98, %p99
      %p101 = scmp.ne.s32.totalorder %s90, %s91
      %p102 = scmp.eq.s32.totalorder %s19, 0
      %p103 = por %p101, %p102
      %p104 = scmp.ne.s32.totalorder %s90, %s91
      %p105 = scmp.eq.s32.totalorder %s20, 1
      %p106 = por %p104, %p105
      %p108 = scmp.ne.s32.totalorder %s91, %s107
      %p109 = scmp.eq.s32.totalorder %s20, 0
      %p110 = por %p108, %p109
      %p111 = scmp.le.s32.totalorder 1, %s14
      %p112 = scmp.lt.s32.totalorder %s14, 3
      %p113 = pnand %p111, %p112
      %p114 = pneg %p113
      // Predicated region
      $region9: #{tpu_custom_call.1} parent=5 // pred_check
        _
      $region10: #{tpu_custom_call.1} parent=5 // pred_check_branch
        %116 = sbr.rel (%p113) target = $region12
      $region11: #{tpu_custom_call.1} parent=5 // pred_region
        %s117 = ssub.s32 %s14, 1
        // Predicated region
        $region13: #{tpu_custom_call.1} parent=11 // pred_check
          %p118 = pneg %p47
        $region14: #{tpu_custom_call.1} parent=11 // pred_check_branch
          %120 = sbr.rel (%p118) target = $region16
        $region15: #{tpu_custom_call.1} parent=11 // pred_region
          _
        $region16: #{tpu_custom_call.1} parent=11 // pred_fallthru
          _
      $region12: #{tpu_custom_call.1} parent=5 // pred_fallthru
        _
      %p121 = scmp.lt.s32.totalorder %s14, 2
      // Predicated region
      $region17: #{tpu_custom_call.1} parent=5 // pred_check
        %p122 = pneg %p121
      $region18: #{tpu_custom_call.1} parent=5 // pred_check_branch
        %124 = sbr.rel (%p122) target = $region20
      $region19: #{tpu_custom_call.1} parent=5 // pred_region
        // Predicated region
        $region21: #{tpu_custom_call.1} parent=19 // pred_check
          %p125 = pneg %p69
        $region22: #{tpu_custom_call.1} parent=19 // pred_check_branch
          %127 = sbr.rel (%p125) target = $region24
        $region23: #{tpu_custom_call.1} parent=19 // pred_region
          %s128 = sand.u32 %s59, 1
          %s129 = scalar_lea.sflag [#allocation3], %s128
          %s130 = sand.u32 %s59, 1
          %s131 = smul.addr %s130, 8
          %s132 = scalar_lea.vmem [#allocation2], %s131
          %s133 = smul.u32 2, %s22
          %s135 = ssub.s32 128, 128
          %136 = vsyncadd %s129, %s135
          %s137 = smul.addr %s21, 2
          %s138 = sadd.s32 %s133, %s137
          %s139 = smul.addr %s138, 64
          %s140 = scalar_lea.hbm %s1, %s139
          %s142 = sshll.u32 %s132, 4
          %s143 = int_to_ptr.vmem [resolvable:$true] %s142
          %145 = dma.hbm_to_vmem [thread:$0]  %s140, 128, %s143, %s129
        $region24: #{tpu_custom_call.1} parent=19 // pred_fallthru
          _
      $region20: #{tpu_custom_call.1} parent=5 // pred_fallthru
        _
      %p146 = scmp.le.s32.totalorder 1, %s14
      %p147 = scmp.lt.s32.totalorder %s14, 3
      %p148 = pnand %p146, %p147
      %p149 = pneg %p148
      // Predicated region
      $region25: #{tpu_custom_call.1} parent=5 // pred_check
        _
      $region26: #{tpu_custom_call.1} parent=5 // pred_check_branch
        %151 = sbr.rel (%p148) target = $region28
      $region27: #{tpu_custom_call.1} parent=5 // pred_region
        %s152 = ssub.s32 %s14, 1
        %s153 = sand.u32 %s62, 1
        %s154 = scalar_lea.sflag [#allocation3], %s153
        %s155 = sand.u32 %s62, 1
        %s156 = smul.addr %s155, 8
        %s157 = scalar_lea.vmem [#allocation2], %s156
        // Predicated region
        $region29: #{tpu_custom_call.1} parent=27 // pred_check
          %p158 = pneg %p75
        $region30: #{tpu_custom_call.1} parent=27 // pred_check_branch
          %160 = sbr.rel (%p158) target = $region32
        $region31: #{tpu_custom_call.1} parent=27 // pred_region
          %161 = dma.done %s154, 128
        $region32: #{tpu_custom_call.1} parent=27 // pred_fallthru
          _
        %p162 = pneg %p47
        %p163 = pneg %p44
        %s164 = sand.u32 %s62, 1
        %s165 = scalar_lea.sflag [#allocation3], %s164
        %s166 = sand.u32 %s62, 1
        %s167 = smul.addr %s166, 8
        %s168 = scalar_lea.vmem [#allocation2], %s167
        %p169 = pneg %p75
        %p170 = pneg %p72
        %p171 = pneg %p103
        %p172 = pneg %p100
        %s173 = sand.u32 %s90, 1
        %s174 = scalar_lea.sflag [#allocation4], %s173
        %s175 = sand.u32 %s90, 1
        %s176 = smul.addr %s175, 8
        %s177 = scalar_lea.vmem [#allocation5], %s176
        %s178 = smul.u32 2, %s24
        %s179 = smul.u32 2, %s24
        %v180 = vld [vmem:[%s157] sm:$0xff]
        %v181 = vmul.f32 %v180, %v180
        %v182 = vlaneseq
        %v183 = vand.u32 %v182, 127
        %v184 = vadd.s32 %v183, 128
        %v186 = vcombine.high %v181, %v181
        %188 = vrot.lane.b32.xlu0 %v181, 127
        %v189 = vpop.permute.xlu0 %188
        %190 = vrot.lane.b32.xlu0 %v186, 127
        %v191 = vpop.permute.xlu0 %190
        %vm192 = vcmp.lt.s32.totalorder %v183, 127
        %v193 = vsel %vm192, %v189, %v191
        %v194 = vsel %vm192, %v191, %v189
        %195 = vrot.lane.b32.xlu0 %v181, 1
        %v196 = vpop.permute.xlu0 %195
        %197 = vrot.lane.b32.xlu0 %v186, 1
        %v198 = vpop.permute.xlu0 %197
        %vm199 = vcmp.lt.s32.totalorder %v183, 1
        %v200 = vsel %vm199, %v196, %v198
        %v201 = vsel %vm199, %v198, %v196
        %v202 = vand.u32 %v183, 1
        %v203 = vand.u32 %v184, 1
        %vm204 = vcmp.eq.s32.totalorder %v202, 0
        %vm205 = vcmp.eq.s32.totalorder %v203, 0
        %v206 = vsel %vm204, %v193, %v201
        %v207 = vsel %vm205, %v194, %v200
        %v210 = vcombine.low %v206, %v207
        %v212 = vadd.f32 %v181, %v210
        %v214 = vcombine.high %v212, %v212
        %216 = vrot.lane.b32.xlu0 %v212, 126
        %v217 = vpop.permute.xlu0 %216
        %218 = vrot.lane.b32.xlu0 %v214, 126
        %v219 = vpop.permute.xlu0 %218
        %vm220 = vcmp.lt.s32.totalorder %v183, 126
        %v221 = vsel %vm220, %v217, %v219
        %v222 = vsel %vm220, %v219, %v217
        %223 = vrot.lane.b32.xlu0 %v212, 2
        %v224 = vpop.permute.xlu0 %223
        %225 = vrot.lane.b32.xlu0 %v214, 2
        %v226 = vpop.permute.xlu0 %225
        %vm227 = vcmp.lt.s32.totalorder %v183, 2
        %v228 = vsel %vm227, %v224, %v226
        %v229 = vsel %vm227, %v226, %v224
        %v230 = vand.u32 %v183, 2
        %v231 = vand.u32 %v184, 2
        %vm232 = vcmp.eq.s32.totalorder %v230, 0
        %vm233 = vcmp.eq.s32.totalorder %v231, 0
        %v234 = vsel %vm232, %v221, %v229
        %v235 = vsel %vm233, %v222, %v228
        %v238 = vcombine.low %v234, %v235
        %v240 = vadd.f32 %v212, %v238
        %v242 = vcombine.high %v240, %v240
        %244 = vrot.lane.b32.xlu0 %v240, 124
        %v245 = vpop.permute.xlu0 %244
        %246 = vrot.lane.b32.xlu0 %v242, 124
        %v247 = vpop.permute.xlu0 %246
        %vm248 = vcmp.lt.s32.totalorder %v183, 124
        %v249 = vsel %vm248, %v245, %v247
        %v250 = vsel %vm248, %v247, %v245
        %251 = vrot.lane.b32.xlu0 %v240, 4
        %v252 = vpop.permute.xlu0 %251
        %253 = vrot.lane.b32.xlu0 %v242, 4
        %v254 = vpop.permute.xlu0 %253
        %vm255 = vcmp.lt.s32.totalorder %v183, 4
        %v256 = vsel %vm255, %v252, %v254
        %v257 = vsel %vm255, %v254, %v252
        %v258 = vand.u32 %v183, 4
        %v259 = vand.u32 %v184, 4
        %vm260 = vcmp.eq.s32.totalorder %v258, 0
        %vm261 = vcmp.eq.s32.totalorder %v259, 0
        %v262 = vsel %vm260, %v249, %v257
        %v263 = vsel %vm261, %v250, %v256
        %v266 = vcombine.low %v262, %v263
        %v268 = vadd.f32 %v240, %v266
        %v270 = vcombine.high %v268, %v268
        %272 = vrot.lane.b32.xlu0 %v268, 120
        %v273 = vpop.permute.xlu0 %272
        %274 = vrot.lane.b32.xlu0 %v270, 120
        %v275 = vpop.permute.xlu0 %274
        %vm276 = vcmp.lt.s32.totalorder %v183, 120
        %v277 = vsel %vm276, %v273, %v275
        %v278 = vsel %vm276, %v275, %v273
        %279 = vrot.lane.b32.xlu0 %v268, 8
        %v280 = vpop.permute.xlu0 %279
        %281 = vrot.lane.b32.xlu0 %v270, 8
        %v282 = vpop.permute.xlu0 %281
        %vm283 = vcmp.lt.s32.totalorder %v183, 8
        %v284 = vsel %vm283, %v280, %v282
        %v285 = vsel %vm283, %v282, %v280
        %v286 = vand.u32 %v183, 8
        %v287 = vand.u32 %v184, 8
        %vm288 = vcmp.eq.s32.totalorder %v286, 0
        %vm289 = vcmp.eq.s32.totalorder %v287, 0
        %v290 = vsel %vm288, %v277, %v285
        %v291 = vsel %vm289, %v278, %v284
        %v294 = vcombine.low %v290, %v291
        %v296 = vadd.f32 %v268, %v294
        %v297 = vrsqrt.pop %v296
        %v298 = vmul.f32 %v296, %v297
        %vm299 = vcmp.eq.f32.partialorder %v296, inf
        %v300 = vsel %vm299, %v296, %v298
        %vm301 = vcmp.eq.f32.partialorder %v296, 0.0
        %v302 = vand.u32 %v296, 2147483648
        %v303 = vsel %vm301, %v302, %v300
        %v304 = vld [vmem:[%s0] sm:$0xf]
        %306 = vset.pattern.permute.xlu0 0
        %307 = vperm.xlu0 %306, %v304
        %v308 = vpop.permute.xlu0 %307
        %v311 = vcombine.high %v303, %v303
        %v313 = vmul.f32 %v308, %v303
        %v314 = vmul.f32 %v308, %v311
        %vm315 = vcmask 1043456
        %v316 = vsel %vm315, %v313, 0.0
        %v317 = vrot.slane %v316, 4
        %v318 = vadd.f32 %v316, %v317
        %v319 = vrot.slane %v318, 2
        %v320 = vadd.f32 %v318, %v319
        %v321 = vrot.slane %v320, 1
        %v322 = vadd.f32 %v320, %v321
        %v323 = vsel %vm315, %v314, 0.0
        %v324 = vrot.slane %v323, 4
        %v325 = vadd.f32 %v323, %v324
        %v326 = vrot.slane %v325, 2
        %v327 = vadd.f32 %v325, %v326
        %v328 = vrot.slane %v327, 1
        %v329 = vadd.f32 %v327, %v328
        %v331 = vcombine.high %v180, %v180
        %v333 = vmul.f32 %v322, %v180
        %v334 = vmul.f32 %v329, %v331
        %v337 = vcombine.low %v333, %v334
        %339 = vst [vmem:[%s177] sm:$0xff] %v337
        %s340 = sand.u32 %s90, 1
        %s341 = scalar_lea.sflag [#allocation4], %s340
        %s342 = sand.u32 %s90, 1
        %s343 = smul.addr %s342, 8
        %s344 = scalar_lea.vmem [#allocation5], %s343
        // Predicated region
        $region33: #{tpu_custom_call.1} parent=27 // pred_check
          %p345 = pneg %p100
        $region34: #{tpu_custom_call.1} parent=27 // pred_check_branch
          %347 = sbr.rel (%p345) target = $region36
        $region35: #{tpu_custom_call.1} parent=27 // pred_region
          %s348 = smul.u32 2, %s24
          %s350 = ssub.s32 128, 128
          %351 = vsyncadd %s341, %s350
          %s352 = smul.addr %s23, 2
          %s353 = sadd.s32 %s348, %s352
          %s354 = smul.addr %s353, 64
          %s355 = scalar_lea.hbm %s2, %s354
          %s357 = sshll.u32 %s344, 4
          %s358 = int_to_ptr.vmem [resolvable:$true] %s357
          %360 = dma.vmem_to_hbm [thread:$0]  %s358, 128, %s355, %s341
        $region36: #{tpu_custom_call.1} parent=27 // pred_fallthru
          _
      $region28: #{tpu_custom_call.1} parent=5 // pred_fallthru
        _
      %p361 = scmp.le.s32.totalorder 2, %s14
      // Predicated region
      $region37: #{tpu_custom_call.1} parent=5 // pred_check
        %p362 = pneg %p361
      $region38: #{tpu_custom_call.1} parent=5 // pred_check_branch
        %364 = sbr.rel (%p362) target = $region40
      $region39: #{tpu_custom_call.1} parent=5 // pred_region
        %s365 = ssub.s32 %s14, 2
        // Predicated region
        $region41: #{tpu_custom_call.1} parent=39 // pred_check
          %p366 = pneg %p106
        $region42: #{tpu_custom_call.1} parent=39 // pred_check_branch
          %368 = sbr.rel (%p366) target = $region44
        $region43: #{tpu_custom_call.1} parent=39 // pred_region
          %s369 = sand.u32 %s91, 1
          %s370 = scalar_lea.sflag [#allocation4], %s369
          %s371 = sand.u32 %s91, 1
          %s372 = smul.addr %s371, 8
          %s373 = scalar_lea.vmem [#allocation5], %s372
          %374 = dma.done %s370, 128
        $region44: #{tpu_custom_call.1} parent=39 // pred_fallthru
          _
      $region40: #{tpu_custom_call.1} parent=5 // pred_fallthru
        _
    $region6: #{tpu_custom_call.1} parent=1 // loop_footer
      %s18 = sadd.s32 1, %s14
    $region7: #{tpu_custom_call.1} parent=1 // loop_footer_branch
      %13 = sbr.rel target = $region3
    $region8: #{tpu_custom_call.1} parent=1 // loop_exit
      _
    %375 = vsyncpa [#allocation3], 1
    %s376 = scalar_lea.sflag [#allocation3], 1
    %377 = vsyncpa %s376, 1
    %378 = vsyncpa [#allocation4], 1
    %s379 = scalar_lea.sflag [#allocation4], 1
    %380 = vsyncpa %s379, 1

</llo_original>
